<compile_context>
chip_gen: v7x
topology: tpu7x:2x2x1
jax: 0.10.0
libtpu: 0.0.40
codegen_flags: <defaults>
</compile_context>

<pallas_src>
import functools

import jax
import jax.numpy as jnp
from jax.experimental import pallas as pl
from jax.experimental.pallas import tpu as pltpu


def _round_up(n: int, m: int) -> int:
    return ((n + m - 1) // m) * m


def _make_kernel(compute_dtype, exact_sigmoid: bool):
    def kernel(x_ref, w1_ref, b1_ref, w2_ref, b2_ref, w3_ref, b3_ref,
               w4_ref, b4_ref, o_ref):
        # In-kernel cast (free VPU op) instead of a wrapper-side HBM pass.
        x = x_ref[...].astype(compute_dtype)

        # Layer 1: Linear(state_num, 128) + ReLU   (MXU, f32 accumulation)
        h = jnp.dot(x, w1_ref[...],
                    preferred_element_type=jnp.float32) + b1_ref[...]
        h = jnp.maximum(h, 0.0).astype(compute_dtype)

        # Layer 2: Linear(128, 128) + Tanh (tanh in compute_dtype -> bf16 EUP
        # packed path on v6e/v7x; plain f32 on the exact path).
        h = jnp.tanh(
            (jnp.dot(h, w2_ref[...], preferred_element_type=jnp.float32)
             + b2_ref[...]).astype(compute_dtype))

        # Layer 3: Linear(128, 64 -> 128 padded) + Tanh (pad columns stay 0).
        h = jnp.tanh(
            (jnp.dot(h, w3_ref[...], preferred_element_type=jnp.float32)
             + b3_ref[...]).astype(compute_dtype))

        # Output layer: Linear(64 -> padded, index_num -> 128 padded) + Sigmoid.
        logits = jnp.dot(h, w4_ref[...],
                         preferred_element_type=jnp.float32) + b4_ref[...]
        if exact_sigmoid:
            out = 1.0 / (1.0 + jnp.exp(-logits))        # exact f32 sigmoid
        else:
            # exp in compute_dtype (bf16 EUP), approx reciprocal in f32 (EUP).
            e = jnp.exp(-logits.astype(compute_dtype)).astype(jnp.float32)
            out = pl.reciprocal(1.0 + e, approx=True)
        o_ref[...] = out.astype(o_ref.dtype)

    return kernel


@functools.partial(jax.jit,
                   static_argnames=("block_b", "compute_dtype", "out_dtype"))
def atlas_index_actor_forward(x, params, *, block_b: int = 1024,
                              compute_dtype=jnp.bfloat16,
                              out_dtype=jnp.bfloat16):
    w1, b1, w2, b2, w3, b3, w4, b4 = params
    B, state_num = x.shape
    index_num = w4.shape[1]

    H1 = w1.shape[1]                    # 128
    H2 = w2.shape[1]                    # 128
    H3 = _round_up(w3.shape[1], 128)    # 64  -> 128 (lane-dense hidden)
    OUTP = _round_up(index_num, 128)    # lane-dense output -> unmasked stores

    # ---- lane padding (zero columns/rows keep real outputs bit-identical) ----
    w3p = jnp.pad(w3, ((0, 0), (0, H3 - w3.shape[1])))
    b3p = jnp.pad(b3, ((0, 0), (0, H3 - b3.shape[1])))
    w4p = jnp.pad(w4, ((0, H3 - w4.shape[0]), (0, OUTP - index_num)))
    b4p = jnp.pad(b4, ((0, 0), (0, OUTP - index_num)))

    # ---- batch handling: no whole-tile padding; only pad if B < 8 ----
    if B < 8:
        xp = jnp.pad(x, ((0, 8 - B), (0, 0)))
    else:
        xp = x                           # passed unchanged (f32), cast in-kernel
    B_eff = xp.shape[0]

    # Batch tile: multiple of 8, capped at block_b, and sized so the grid has
    # >= 2 steps (lets v7x shard the "parallel" axis across its 2 TensorCores).
    TB = min(block_b, max(8, _round_up(pl.cdiv(B_eff, 2), 8)))
    grid = (pl.cdiv(B_eff, TB),)        # partial last block is masked by Pallas

    # bf16 (or f32) matmul operands; biases stay f32 (f32 accumulation).
    cd = jnp.dtype(compute_dtype)
    w1c = w1.astype(cd)
    w2c = w2.astype(cd)
    w3c = w3p.astype(cd)
    w4c = w4p.astype(cd)
    b1c = b1.astype(jnp.float32)
    b2c = b2.astype(jnp.float32)
    b3c = b3p.astype(jnp.float32)
    b4c = b4p.astype(jnp.float32)

    def resident(shape):
        # Weights/biases: constant block index -> DMA'd once, VMEM-resident.
        return pl.BlockSpec(shape, lambda i: (0, 0))

    # Scheduler hint (kept consistent with the actual, unpadded traffic).
    flops = 2 * B_eff * (state_num * H1 + H1 * H2 + H2 * H3 + H3 * OUTP)
    transcendentals = B_eff * (H2 + H3 + OUTP)          # tanh, tanh, exp
    weight_bytes = sum(int(a.size) * a.dtype.itemsize
                       for a in (w1c, b1c, w2c, b2c, w3c, b3c, w4c, b4c))
    bytes_accessed = int(B_eff * state_num * xp.dtype.itemsize
                         + weight_bytes
                         + B_eff * OUTP * jnp.dtype(out_dtype).itemsize)

    exact_sigmoid = (cd == jnp.float32)
    kernel = _make_kernel(cd, exact_sigmoid)

    out = pl.pallas_call(
        kernel,
        out_shape=jax.ShapeDtypeStruct((B_eff, OUTP), out_dtype),
        grid=grid,
        in_specs=[
            pl.BlockSpec((TB, state_num), lambda i: (i, 0)),   # x: batch-tiled
            resident((state_num, H1)), resident((1, H1)),
            resident((H1, H2)),        resident((1, H2)),
            resident((H2, H3)),        resident((1, H3)),
            resident((H3, OUTP)),      resident((1, OUTP)),
        ],
        out_specs=pl.BlockSpec((TB, OUTP), lambda i: (i, 0)),
        compiler_params=pltpu.CompilerParams(
            dimension_semantics=("parallel",)),   # batch axis -> megacore shard
        cost_estimate=pl.CostEstimate(
            flops=flops,
            transcendentals=transcendentals,
            bytes_accessed=bytes_accessed),
    )(xp, w1c, b1c, w2c, b2c, w3c, b3c, w4c, b4c)

    return out[:B, :index_num]


def init_params(key, state_num, index_num):
    """Deterministic init mirroring Atlas_Index_Actor._init_weights for the
    hidden Linear layers (weights ~ N(0, 0.01), biases ~ U(-0.1, 0.1)); the
    PyTorch out_layer uses default init, here we use the same scheme for a
    deterministic, self-contained test."""
    ks = jax.random.split(key, 8)
    w1 = 0.01 * jax.random.normal(ks[0], (state_num, 128), jnp.float32)
    b1 = jax.random.uniform(ks[1], (1, 128), jnp.float32, -0.1, 0.1)
    w2 = 0.01 * jax.random.normal(ks[2], (128, 128), jnp.float32)
    b2 = jax.random.uniform(ks[3], (1, 128), jnp.float32, -0.1, 0.1)
    w3 = 0.01 * jax.random.normal(ks[4], (128, 64), jnp.float32)
    b3 = jax.random.uniform(ks[5], (1, 64), jnp.float32, -0.1, 0.1)
    w4 = 0.01 * jax.random.normal(ks[6], (64, index_num), jnp.float32)
    b4 = jax.random.uniform(ks[7], (1, index_num), jnp.float32, -0.1, 0.1)
    return (w1, b1, w2, b2, w3, b3, w4, b4)


def reference_forward(x, params):
    w1, b1, w2, b2, w3, b3, w4, b4 = params
    h1 = jax.nn.relu(x @ w1 + b1)
    h2 = jnp.tanh(h1 @ w2 + b2)
    h3 = jnp.tanh(h2 @ w3 + b3)
    return jax.nn.sigmoid(h3 @ w4 + b4)


if __name__ == "__main__":
    batch = 20            # not a multiple of 8: exercises the masked last block
    state_num = 32
    index_num = 16

    key = jax.random.PRNGKey(0)
    k_x, k_p = jax.random.split(key)
    x = jax.random.normal(k_x, (batch, state_num), jnp.float32)
    params = init_params(k_p, state_num, index_num)

    ref = reference_forward(x, params)

    # Exact f32 path, small tile -> multiple grid steps + partial last block.
    out_f32 = atlas_index_actor_forward(x, params, block_b=8,
                                        compute_dtype=jnp.float32,
                                        out_dtype=jnp.float32)
    out_f32 = jax.block_until_ready(out_f32)
    assert out_f32.shape == (batch, index_num), out_f32.shape
    assert jnp.allclose(out_f32, ref, atol=1e-5, rtol=0), "f32 kernel mismatch"

    # Default bf16 path (bf16 MXU operands + bf16 EUP transcendentals +
    # bf16 output), looser tolerance.
    out_bf16 = atlas_index_actor_forward(x, params)
    out_bf16 = jax.block_until_ready(out_bf16)
    assert out_bf16.shape == (batch, index_num), out_bf16.shape
    assert out_bf16.dtype == jnp.bfloat16, out_bf16.dtype
    assert jnp.allclose(out_bf16.astype(jnp.float32), ref,
                        atol=2e-2, rtol=0), "bf16 kernel mismatch"

    print("KERNEL_OK")
</pallas_src>

<mosaic_0001>
module attributes {stable_mosaic.version = 11 : i64} {
  func.func @kernel(%arg0: i32, %arg1: memref<8x32xf32, #tpu.memory_space<vmem>>, %arg2: memref<32x128xf32, #tpu.memory_space<vmem>>, %arg3: memref<1x128xf32, #tpu.memory_space<vmem>>, %arg4: memref<128x128xf32, #tpu.memory_space<vmem>>, %arg5: memref<1x128xf32, #tpu.memory_space<vmem>>, %arg6: memref<128x128xf32, #tpu.memory_space<vmem>>, %arg7: memref<1x128xf32, #tpu.memory_space<vmem>>, %arg8: memref<128x128xf32, #tpu.memory_space<vmem>>, %arg9: memref<1x128xf32, #tpu.memory_space<vmem>>, %arg10: memref<8x128xf32, #tpu.memory_space<vmem>>) attributes {dimension_semantics = [#tpu.dimension_semantics<parallel>], iteration_bounds = array<i64: 3>, scalar_prefetch = 0 : i64, scratch_operands = 0 : i64, tpu.core_type = #tpu.core_type<tc>, window_params = [{transform_indices = @transform_0, window_bounds = array<i64: 8, 32>}, {pipeline_mode = #tpu.pipeline_mode<synchronous>, transform_indices = @transform_1, window_bounds = array<i64: 32, 128>}, {pipeline_mode = #tpu.pipeline_mode<synchronous>, transform_indices = @transform_2, window_bounds = array<i64: 1, 128>}, {pipeline_mode = #tpu.pipeline_mode<synchronous>, transform_indices = @transform_3, window_bounds = array<i64: 128, 128>}, {pipeline_mode = #tpu.pipeline_mode<synchronous>, transform_indices = @transform_4, window_bounds = array<i64: 1, 128>}, {pipeline_mode = #tpu.pipeline_mode<synchronous>, transform_indices = @transform_5, window_bounds = array<i64: 128, 128>}, {pipeline_mode = #tpu.pipeline_mode<synchronous>, transform_indices = @transform_6, window_bounds = array<i64: 1, 128>}, {pipeline_mode = #tpu.pipeline_mode<synchronous>, transform_indices = @transform_7, window_bounds = array<i64: 128, 128>}, {pipeline_mode = #tpu.pipeline_mode<synchronous>, transform_indices = @transform_8, window_bounds = array<i64: 1, 128>}, {transform_indices = @transform_9, window_bounds = array<i64: 8, 128>}]} {
    %c0 = arith.constant 0 : index
    %c0_0 = arith.constant 0 : index
    %0 = vector.load %arg1[%c0, %c0_0] : memref<8x32xf32, #tpu.memory_space<vmem>>, vector<8x32xf32>
    %c0_1 = arith.constant 0 : index
    %c0_2 = arith.constant 0 : index
    %1 = vector.load %arg2[%c0_1, %c0_2] : memref<32x128xf32, #tpu.memory_space<vmem>>, vector<32x128xf32>
    %cst = arith.constant dense<0.000000e+00> : vector<8x128xf32>
    %2 = tpu.matmul %0, %1, %cst {dimension_numbers = #tpu.dot_dimension_numbers<[1], [0], [0], [1], [0, 0, 1, 1], [], []>} : vector<8x32xf32>, vector<32x128xf32>, vector<8x128xf32> -> vector<8x128xf32>
    %c0_3 = arith.constant 0 : index
    %c0_4 = arith.constant 0 : index
    %3 = vector.load %arg3[%c0_3, %c0_4] : memref<1x128xf32, #tpu.memory_space<vmem>>, vector<1x128xf32>
    %4 = vector.broadcast %3 : vector<1x128xf32> to vector<8x128xf32>
    %5 = arith.addf %2, %4 : vector<8x128xf32>
    %cst_5 = arith.constant 0.000000e+00 : f32
    %6 = vector.broadcast %cst_5 : f32 to vector<8x128xf32>
    %7 = arith.maximumf %5, %6 : vector<8x128xf32>
    %c0_6 = arith.constant 0 : index
    %c0_7 = arith.constant 0 : index
    %8 = vector.load %arg4[%c0_6, %c0_7] : memref<128x128xf32, #tpu.memory_space<vmem>>, vector<128x128xf32>
    %cst_8 = arith.constant dense<0.000000e+00> : vector<8x128xf32>
    %9 = tpu.matmul %7, %8, %cst_8 {dimension_numbers = #tpu.dot_dimension_numbers<[1], [0], [0], [1], [0, 0, 1, 1], [], []>} : vector<8x128xf32>, vector<128x128xf32>, vector<8x128xf32> -> vector<8x128xf32>
    %c0_9 = arith.constant 0 : index
    %c0_10 = arith.constant 0 : index
    %10 = vector.load %arg5[%c0_9, %c0_10] : memref<1x128xf32, #tpu.memory_space<vmem>>, vector<1x128xf32>
    %11 = vector.broadcast %10 : vector<1x128xf32> to vector<8x128xf32>
    %12 = arith.addf %9, %11 : vector<8x128xf32>
    %13 = math.tanh %12 : vector<8x128xf32>
    %c0_11 = arith.constant 0 : index
    %c0_12 = arith.constant 0 : index
    %14 = vector.load %arg6[%c0_11, %c0_12] : memref<128x128xf32, #tpu.memory_space<vmem>>, vector<128x128xf32>
    %cst_13 = arith.constant dense<0.000000e+00> : vector<8x128xf32>
    %15 = tpu.matmul %13, %14, %cst_13 {dimension_numbers = #tpu.dot_dimension_numbers<[1], [0], [0], [1], [0, 0, 1, 1], [], []>} : vector<8x128xf32>, vector<128x128xf32>, vector<8x128xf32> -> vector<8x128xf32>
    %c0_14 = arith.constant 0 : index
    %c0_15 = arith.constant 0 : index
    %16 = vector.load %arg7[%c0_14, %c0_15] : memref<1x128xf32, #tpu.memory_space<vmem>>, vector<1x128xf32>
    %17 = vector.broadcast %16 : vector<1x128xf32> to vector<8x128xf32>
    %18 = arith.addf %15, %17 : vector<8x128xf32>
    %19 = math.tanh %18 : vector<8x128xf32>
    %c0_16 = arith.constant 0 : index
    %c0_17 = arith.constant 0 : index
    %20 = vector.load %arg8[%c0_16, %c0_17] : memref<128x128xf32, #tpu.memory_space<vmem>>, vector<128x128xf32>
    %cst_18 = arith.constant dense<0.000000e+00> : vector<8x128xf32>
    %21 = tpu.matmul %19, %20, %cst_18 {dimension_numbers = #tpu.dot_dimension_numbers<[1], [0], [0], [1], [0, 0, 1, 1], [], []>} : vector<8x128xf32>, vector<128x128xf32>, vector<8x128xf32> -> vector<8x128xf32>
    %c0_19 = arith.constant 0 : index
    %c0_20 = arith.constant 0 : index
    %22 = vector.load %arg9[%c0_19, %c0_20] : memref<1x128xf32, #tpu.memory_space<vmem>>, vector<1x128xf32>
    %23 = vector.broadcast %22 : vector<1x128xf32> to vector<8x128xf32>
    %24 = arith.addf %21, %23 : vector<8x128xf32>
    %cst_21 = arith.constant 0.000000e+00 : f32
    %25 = vector.broadcast %cst_21 : f32 to vector<8x128xf32>
    %26 = arith.subf %25, %24 : vector<8x128xf32>
    %27 = math.exp %26 : vector<8x128xf32>
    %cst_22 = arith.constant 1.000000e+00 : f32
    %28 = vector.broadcast %cst_22 : f32 to vector<8x128xf32>
    %29 = arith.addf %28, %27 : vector<8x128xf32>
    %cst_23 = arith.constant 1.000000e+00 : f32
    %30 = vector.broadcast %cst_23 : f32 to vector<8x128xf32>
    %31 = arith.divf %30, %29 : vector<8x128xf32>
    %c0_24 = arith.constant 0 : index
    %c0_25 = arith.constant 0 : index
    %32 = vector.load %arg10[%c0_24, %c0_25] : memref<8x128xf32, #tpu.memory_space<vmem>>, vector<8x128xf32>
    tpu.vector_store %arg10[%c0_24, %c0_25], %31 {strides = array<i32>} : memref<8x128xf32, #tpu.memory_space<vmem>>, vector<8x128xf32>,
    return
  }
  func.func @transform_0(%arg0: i32) -> (i32, i32) {
    %c0_i32 = arith.constant 0 : i32
    %c0_i32_0 = arith.constant 0 : i32
    return %arg0, %c0_i32 : i32, i32
  }
  func.func @transform_1(%arg0: i32) -> (i32, i32) {
    %c0_i32 = arith.constant 0 : i32
    %c0_i32_0 = arith.constant 0 : i32
    %c0_i32_1 = arith.constant 0 : i32
    return %c0_i32, %c0_i32_0 : i32, i32
  }
  func.func @transform_2(%arg0: i32) -> (i32, i32) {
    %c0_i32 = arith.constant 0 : i32
    %c0_i32_0 = arith.constant 0 : i32
    %c0_i32_1 = arith.constant 0 : i32
    return %c0_i32, %c0_i32_0 : i32, i32
  }
  func.func @transform_3(%arg0: i32) -> (i32, i32) {
    %c0_i32 = arith.constant 0 : i32
    %c0_i32_0 = arith.constant 0 : i32
    %c0_i32_1 = arith.constant 0 : i32
    return %c0_i32, %c0_i32_0 : i32, i32
  }
  func.func @transform_4(%arg0: i32) -> (i32, i32) {
    %c0_i32 = arith.constant 0 : i32
    %c0_i32_0 = arith.constant 0 : i32
    %c0_i32_1 = arith.constant 0 : i32
    return %c0_i32, %c0_i32_0 : i32, i32
  }
  func.func @transform_5(%arg0: i32) -> (i32, i32) {
    %c0_i32 = arith.constant 0 : i32
    %c0_i32_0 = arith.constant 0 : i32
    %c0_i32_1 = arith.constant 0 : i32
    return %c0_i32, %c0_i32_0 : i32, i32
  }
  func.func @transform_6(%arg0: i32) -> (i32, i32) {
    %c0_i32 = arith.constant 0 : i32
    %c0_i32_0 = arith.constant 0 : i32
    %c0_i32_1 = arith.constant 0 : i32
    return %c0_i32, %c0_i32_0 : i32, i32
  }
  func.func @transform_7(%arg0: i32) -> (i32, i32) {
    %c0_i32 = arith.constant 0 : i32
    %c0_i32_0 = arith.constant 0 : i32
    %c0_i32_1 = arith.constant 0 : i32
    return %c0_i32, %c0_i32_0 : i32, i32
  }
  func.func @transform_8(%arg0: i32) -> (i32, i32) {
    %c0_i32 = arith.constant 0 : i32
    %c0_i32_0 = arith.constant 0 : i32
    %c0_i32_1 = arith.constant 0 : i32
    return %c0_i32, %c0_i32_0 : i32, i32
  }
  func.func @transform_9(%arg0: i32) -> (i32, i32) {
    %c0_i32 = arith.constant 0 : i32
    %c0_i32_0 = arith.constant 0 : i32
    return %arg0, %c0_i32 : i32, i32
  }
}

</mosaic_0001>

<llo_original>
// kernel: atlas_index_actor_forward.1
$region0: #{atlas_index_actor_forward.1}
  #allocation0 [shape = 'u32[]', space=smem, size = 0x4, offset = 0x4, fixed_abs, tag = 'smem constant byte address 0x4 - core index']
  #allocation1 [shape = 'u32[144,128]{1,0:T(1,128)}', space=vmem, size = 0x12000, scoped, tag = 'internal scratch']
  %s0 = inlined_call_operand.vmem [shape: f32[20,32], index: 0, kind: input, shape index: {}]
  %s1 = inlined_call_operand.vmem [shape: f32[32,128], index: 1, kind: input, shape index: {}]
  %s2 = inlined_call_operand.vmem [shape: f32[1,128], index: 2, kind: input, shape index: {}]
  %s3 = inlined_call_operand.vmem [shape: f32[128,128], index: 3, kind: input, shape index: {}]
  %s4 = inlined_call_operand.vmem [shape: f32[1,128], index: 4, kind: input, shape index: {}]
  %s5 = inlined_call_operand.vmem [shape: f32[128,128], index: 5, kind: input, shape index: {}]
  %s6 = inlined_call_operand.vmem [shape: f32[1,128], index: 6, kind: input, shape index: {}]
  %s7 = inlined_call_operand.vmem [shape: f32[128,128], index: 7, kind: input, shape index: {}]
  %s8 = inlined_call_operand.vmem [shape: f32[1,128], index: 8, kind: input, shape index: {}]
  %s9 = inlined_call_operand.vmem [shape: f32[20,128], index: 9, kind: output, shape index: {}]
  %s10 = sld [smem:[#allocation0]]
  $region69: #{atlas_index_actor_forward.1} parent=0
    _
  %s12 = ssub.s32 1, %s10
  %s13 = scalar_select 0, %s12, %s10
  loop: start=0, step=1, limit=5
  $region2: #{atlas_index_actor_forward.1} parent=0 // loop_pre_header
    _
  $region3: #{atlas_index_actor_forward.1} parent=0 // loop_header
    %s15 = sphi 0, %s19
    %p16 = scmp.ge.s32.totalorder %s15, 5
    %s25 = sphi 0, %s27
    %s28 = sphi 0, %s25
    %s29 = sphi 0, %s28
    %s45 = sphi 0, %s29
    %s49 = sphi 0, %s49
    %s51 = sphi 0, %s49
    %s52 = sphi 0, %s51
    %s66 = sphi 0, %s52
    %s70 = sphi 0, %s70
    %s72 = sphi 0, %s70
    %s73 = sphi 0, %s72
    %s87 = sphi 0, %s73
    %s91 = sphi 0, %s91
    %s93 = sphi 0, %s91
    %s94 = sphi 0, %s93
    %s108 = sphi 0, %s94
    %s112 = sphi 0, %s112
    %s114 = sphi 0, %s112
    %s115 = sphi 0, %s114
    %s129 = sphi 0, %s115
    %s133 = sphi 0, %s133
    %s135 = sphi 0, %s133
    %s136 = sphi 0, %s135
    %s150 = sphi 0, %s136
    %s154 = sphi 0, %s154
    %s156 = sphi 0, %s154
    %s157 = sphi 0, %s156
    %s171 = sphi 0, %s157
    %s175 = sphi 0, %s175
    %s177 = sphi 0, %s175
    %s178 = sphi 0, %s177
    %s192 = sphi 0, %s178
    %s196 = sphi 0, %s196
    %s198 = sphi 0, %s196
    %s199 = sphi 0, %s198
    %s213 = sphi 0, %s199
    %s219 = sphi 0, %s221
    %s222 = sphi 0, %s219
    %s223 = sphi 0, %s222
    %s239 = sphi 0, %s223
  $region4: #{atlas_index_actor_forward.1} parent=0 // loop_header_branch
    %18 = sbr.rel (%p16) target = $region8
  $region5: #{atlas_index_actor_forward.1} parent=0 // loop_body
    %s20 = ssub.s32 %s15, 1
    %s21 = ssub.s32 %s15, 2
    %s22 = sadd.s32 %s15, 1
    %s23 = ssub.s32 %s15, %s22
    %p24 = scmp.eq.s32.totalorder %s23, 0
    %s26 = sadd.s32 %s25, 1
    %s27 = scalar_select %p24, %s25, %s26
    %p30 = pneg %p24
    %p31 = scmp.eq.s32.totalorder %s15, 2
    %p32 = por %p30, %p31
    %p33 = scmp.ne.s32.totalorder %s25, %s28
    %p34 = scmp.eq.s32.totalorder %s15, 0
    %p35 = por %p33, %p34
    %p36 = scmp.ne.s32.totalorder %s25, %s28
    %p37 = scmp.eq.s32.totalorder %s20, 2
    %p38 = por %p36, %p37
    %p39 = scmp.ne.s32.totalorder %s28, %s29
    %p40 = scmp.eq.s32.totalorder %s20, 0
    %p41 = por %p39, %p40
    %p42 = scmp.ne.s32.totalorder %s28, %s29
    %p43 = scmp.eq.s32.totalorder %s21, 2
    %p44 = por %p42, %p43
    %p46 = scmp.ne.s32.totalorder %s29, %s45
    %p47 = scmp.eq.s32.totalorder %s21, 0
    %p48 = por %p46, %p47
    %s50 = sadd.s32 %s49, 1
    %p53 = scmp.eq.s32.totalorder %s15, 2
    %p54 = scmp.ne.s32.totalorder %s49, %s51
    %p55 = scmp.eq.s32.totalorder %s15, 0
    %p56 = por %p54, %p55
    %p57 = scmp.ne.s32.totalorder %s49, %s51
    %p58 = scmp.eq.s32.totalorder %s20, 2
    %p59 = por %p57, %p58
    %p60 = scmp.ne.s32.totalorder %s51, %s52
    %p61 = scmp.eq.s32.totalorder %s20, 0
    %p62 = por %p60, %p61
    %p63 = scmp.ne.s32.totalorder %s51, %s52
    %p64 = scmp.eq.s32.totalorder %s21, 2
    %p65 = por %p63, %p64
    %p67 = scmp.ne.s32.totalorder %s52, %s66
    %p68 = scmp.eq.s32.totalorder %s21, 0
    %p69 = por %p67, %p68
    %s71 = sadd.s32 %s70, 1
    %p74 = scmp.eq.s32.totalorder %s15, 2
    %p75 = scmp.ne.s32.totalorder %s70, %s72
    %p76 = scmp.eq.s32.totalorder %s15, 0
    %p77 = por %p75, %p76
    %p78 = scmp.ne.s32.totalorder %s70, %s72
    %p79 = scmp.eq.s32.totalorder %s20, 2
    %p80 = por %p78, %p79
    %p81 = scmp.ne.s32.totalorder %s72, %s73
    %p82 = scmp.eq.s32.totalorder %s20, 0
    %p83 = por %p81, %p82
    %p84 = scmp.ne.s32.totalorder %s72, %s73
    %p85 = scmp.eq.s32.totalorder %s21, 2
    %p86 = por %p84, %p85
    %p88 = scmp.ne.s32.totalorder %s73, %s87
    %p89 = scmp.eq.s32.totalorder %s21, 0
    %p90 = por %p88, %p89
    %s92 = sadd.s32 %s91, 1
    %p95 = scmp.eq.s32.totalorder %s15, 2
    %p96 = scmp.ne.s32.totalorder %s91, %s93
    %p97 = scmp.eq.s32.totalorder %s15, 0
    %p98 = por %p96, %p97
    %p99 = scmp.ne.s32.totalorder %s91, %s93
    %p100 = scmp.eq.s32.totalorder %s20, 2
    %p101 = por %p99, %p100
    %p102 = scmp.ne.s32.totalorder %s93, %s94
    %p103 = scmp.eq.s32.totalorder %s20, 0
    %p104 = por %p102, %p103
    %p105 = scmp.ne.s32.totalorder %s93, %s94
    %p106 = scmp.eq.s32.totalorder %s21, 2
    %p107 = por %p105, %p106
    %p109 = scmp.ne.s32.totalorder %s94, %s108
    %p110 = scmp.eq.s32.totalorder %s21, 0
    %p111 = por %p109, %p110
    %s113 = sadd.s32 %s112, 1
    %p116 = scmp.eq.s32.totalorder %s15, 2
    %p117 = scmp.ne.s32.totalorder %s112, %s114
    %p118 = scmp.eq.s32.totalorder %s15, 0
    %p119 = por %p117, %p118
    %p120 = scmp.ne.s32.totalorder %s112, %s114
    %p121 = scmp.eq.s32.totalorder %s20, 2
    %p122 = por %p120, %p121
    %p123 = scmp.ne.s32.totalorder %s114, %s115
    %p124 = scmp.eq.s32.totalorder %s20, 0
    %p125 = por %p123, %p124
    %p126 = scmp.ne.s32.totalorder %s114, %s115
    %p127 = scmp.eq.s32.totalorder %s21, 2
    %p128 = por %p126, %p127
    %p130 = scmp.ne.s32.totalorder %s115, %s129
    %p131 = scmp.eq.s32.totalorder %s21, 0
    %p132 = por %p130, %p131
    %s134 = sadd.s32 %s133, 1
    %p137 = scmp.eq.s32.totalorder %s15, 2
    %p138 = scmp.ne.s32.totalorder %s133, %s135
    %p139 = scmp.eq.s32.totalorder %s15, 0
    %p140 = por %p138, %p139
    %p141 = scmp.ne.s32.totalorder %s133, %s135
    %p142 = scmp.eq.s32.totalorder %s20, 2
    %p143 = por %p141, %p142
    %p144 = scmp.ne.s32.totalorder %s135, %s136
    %p145 = scmp.eq.s32.totalorder %s20, 0
    %p146 = por %p144, %p145
    %p147 = scmp.ne.s32.totalorder %s135, %s136
    %p148 = scmp.eq.s32.totalorder %s21, 2
    %p149 = por %p147, %p148
    %p151 = scmp.ne.s32.totalorder %s136, %s150
    %p152 = scmp.eq.s32.totalorder %s21, 0
    %p153 = por %p151, %p152
    %s155 = sadd.s32 %s154, 1
    %p158 = scmp.eq.s32.totalorder %s15, 2
    %p159 = scmp.ne.s32.totalorder %s154, %s156
    %p160 = scmp.eq.s32.totalorder %s15, 0
    %p161 = por %p159, %p160
    %p162 = scmp.ne.s32.totalorder %s154, %s156
    %p163 = scmp.eq.s32.totalorder %s20, 2
    %p164 = por %p162, %p163
    %p165 = scmp.ne.s32.totalorder %s156, %s157
    %p166 = scmp.eq.s32.totalorder %s20, 0
    %p167 = por %p165, %p166
    %p168 = scmp.ne.s32.totalorder %s156, %s157
    %p169 = scmp.eq.s32.totalorder %s21, 2
    %p170 = por %p168, %p169
    %p172 = scmp.ne.s32.totalorder %s157, %s171
    %p173 = scmp.eq.s32.totalorder %s21, 0
    %p174 = por %p172, %p173
    %s176 = sadd.s32 %s175, 1
    %p179 = scmp.eq.s32.totalorder %s15, 2
    %p180 = scmp.ne.s32.totalorder %s175, %s177
    %p181 = scmp.eq.s32.totalorder %s15, 0
    %p182 = por %p180, %p181
    %p183 = scmp.ne.s32.totalorder %s175, %s177
    %p184 = scmp.eq.s32.totalorder %s20, 2
    %p185 = por %p183, %p184
    %p186 = scmp.ne.s32.totalorder %s177, %s178
    %p187 = scmp.eq.s32.totalorder %s20, 0
    %p188 = por %p186, %p187
    %p189 = scmp.ne.s32.totalorder %s177, %s178
    %p190 = scmp.eq.s32.totalorder %s21, 2
    %p191 = por %p189, %p190
    %p193 = scmp.ne.s32.totalorder %s178, %s192
    %p194 = scmp.eq.s32.totalorder %s21, 0
    %p195 = por %p193, %p194
    %s197 = sadd.s32 %s196, 1
    %p200 = scmp.eq.s32.totalorder %s15, 2
    %p201 = scmp.ne.s32.totalorder %s196, %s198
    %p202 = scmp.eq.s32.totalorder %s15, 0
    %p203 = por %p201, %p202
    %p204 = scmp.ne.s32.totalorder %s196, %s198
    %p205 = scmp.eq.s32.totalorder %s20, 2
    %p206 = por %p204, %p205
    %p207 = scmp.ne.s32.totalorder %s198, %s199
    %p208 = scmp.eq.s32.totalorder %s20, 0
    %p209 = por %p207, %p208
    %p210 = scmp.ne.s32.totalorder %s198, %s199
    %p211 = scmp.eq.s32.totalorder %s21, 2
    %p212 = por %p210, %p211
    %p214 = scmp.ne.s32.totalorder %s199, %s213
    %p215 = scmp.eq.s32.totalorder %s21, 0
    %p216 = por %p214, %p215
    %s217 = ssub.s32 %s15, %s22
    %p218 = scmp.eq.s32.totalorder %s217, 0
    %s220 = sadd.s32 %s219, 1
    %s221 = scalar_select %p218, %s219, %s220
    %p224 = pneg %p218
    %p225 = scmp.eq.s32.totalorder %s15, 2
    %p226 = por %p224, %p225
    %p227 = scmp.ne.s32.totalorder %s219, %s222
    %p228 = scmp.eq.s32.totalorder %s15, 0
    %p229 = por %p227, %p228
    %p230 = scmp.ne.s32.totalorder %s219, %s222
    %p231 = scmp.eq.s32.totalorder %s20, 2
    %p232 = por %p230, %p231
    %p233 = scmp.ne.s32.totalorder %s222, %s223
    %p234 = scmp.eq.s32.totalorder %s20, 0
    %p235 = por %p233, %p234
    %p236 = scmp.ne.s32.totalorder %s222, %s223
    %p237 = scmp.eq.s32.totalorder %s21, 2
    %p238 = por %p236, %p237
    %p240 = scmp.ne.s32.totalorder %s223, %s239
    %p241 = scmp.eq.s32.totalorder %s21, 0
    %p242 = por %p240, %p241
    %p243 = scmp.le.s32.totalorder 1, %s15
    %p244 = scmp.lt.s32.totalorder %s15, 4
    %p245 = pnand %p243, %p244
    %p246 = pneg %p245
    // Predicated region
    $region9: #{atlas_index_actor_forward.1} parent=5 // pred_check
      _
    $region10: #{atlas_index_actor_forward.1} parent=5 // pred_check_branch
      %248 = sbr.rel (%p245) target = $region12
    $region11: #{atlas_index_actor_forward.1} parent=5 // pred_region
      %s249 = ssub.s32 %s15, 1
      // Predicated region
      $region13: #{atlas_index_actor_forward.1} parent=11 // pred_check
        %p250 = pneg %p62
      $region14: #{atlas_index_actor_forward.1} parent=11 // pred_check_branch
        %252 = sbr.rel (%p250) target = $region16
      $region15: #{atlas_index_actor_forward.1} parent=11 // pred_region
        _
      $region16: #{atlas_index_actor_forward.1} parent=11 // pred_fallthru
        _
      // Predicated region
      $region17: #{atlas_index_actor_forward.1} parent=11 // pred_check
        %p253 = pneg %p83
      $region18: #{atlas_index_actor_forward.1} parent=11 // pred_check_branch
        %255 = sbr.rel (%p253) target = $region20
      $region19: #{atlas_index_actor_forward.1} parent=11 // pred_region
        _
      $region20: #{atlas_index_actor_forward.1} parent=11 // pred_fallthru
        _
      // Predicated region
      $region21: #{atlas_index_actor_forward.1} parent=11 // pred_check
        %p256 = pneg %p104
      $region22: #{atlas_index_actor_forward.1} parent=11 // pred_check_branch
        %258 = sbr.rel (%p256) target = $region24
      $region23: #{atlas_index_actor_forward.1} parent=11 // pred_region
        _
      $region24: #{atlas_index_actor_forward.1} parent=11 // pred_fallthru
        _
      // Predicated region
      $region25: #{atlas_index_actor_forward.1} parent=11 // pred_check
        %p259 = pneg %p125
      $region26: #{atlas_index_actor_forward.1} parent=11 // pred_check_branch
        %261 = sbr.rel (%p259) target = $region28
      $region27: #{atlas_index_actor_forward.1} parent=11 // pred_region
        _
      $region28: #{atlas_index_actor_forward.1} parent=11 // pred_fallthru
        _
      // Predicated region
      $region29: #{atlas_index_actor_forward.1} parent=11 // pred_check
        %p262 = pneg %p146
      $region30: #{atlas_index_actor_forward.1} parent=11 // pred_check_branch
        %264 = sbr.rel (%p262) target = $region32
      $region31: #{atlas_index_actor_forward.1} parent=11 // pred_region
        _
      $region32: #{atlas_index_actor_forward.1} parent=11 // pred_fallthru
        _
      // Predicated region
      $region33: #{atlas_index_actor_forward.1} parent=11 // pred_check
        %p265 = pneg %p167
      $region34: #{atlas_index_actor_forward.1} parent=11 // pred_check_branch
        %267 = sbr.rel (%p265) target = $region36
      $region35: #{atlas_index_actor_forward.1} parent=11 // pred_region
        _
      $region36: #{atlas_index_actor_forward.1} parent=11 // pred_fallthru
        _
      // Predicated region
      $region37: #{atlas_index_actor_forward.1} parent=11 // pred_check
        %p268 = pneg %p188
      $region38: #{atlas_index_actor_forward.1} parent=11 // pred_check_branch
        %270 = sbr.rel (%p268) target = $region40
      $region39: #{atlas_index_actor_forward.1} parent=11 // pred_region
        _
      $region40: #{atlas_index_actor_forward.1} parent=11 // pred_fallthru
        _
      // Predicated region
      $region41: #{atlas_index_actor_forward.1} parent=11 // pred_check
        %p271 = pneg %p209
      $region42: #{atlas_index_actor_forward.1} parent=11 // pred_check_branch
        %273 = sbr.rel (%p271) target = $region44
      $region43: #{atlas_index_actor_forward.1} parent=11 // pred_region
        _
      $region44: #{atlas_index_actor_forward.1} parent=11 // pred_fallthru
        _
    $region12: #{atlas_index_actor_forward.1} parent=5 // pred_fallthru
      _
    %p274 = scmp.lt.s32.totalorder %s15, 3
    // Predicated region
    $region45: #{atlas_index_actor_forward.1} parent=5 // pred_check
      %p275 = pneg %p274
    $region46: #{atlas_index_actor_forward.1} parent=5 // pred_check_branch
      %277 = sbr.rel (%p275) target = $region48
    $region47: #{atlas_index_actor_forward.1} parent=5 // pred_region
      // Predicated region
      $region49: #{atlas_index_actor_forward.1} parent=47 // pred_check
        %p278 = pneg %p35
      $region50: #{atlas_index_actor_forward.1} parent=47 // pred_check_branch
        %280 = sbr.rel (%p278) target = $region52
      $region51: #{atlas_index_actor_forward.1} parent=47 // pred_region
        %p281 = scmp.lt.s32.totalorder %s15, 2
        %s282 = scalar_select %p281, %s15, 2
        %s283 = smul.addr %s282, 8
        %s284 = scalar_lea.vmem %s0, %s283
      $region52: #{atlas_index_actor_forward.1} parent=47 // pred_fallthru
        _
    $region48: #{atlas_index_actor_forward.1} parent=5 // pred_fallthru
      _
    %p285 = scmp.le.s32.totalorder 1, %s15
    %p286 = scmp.lt.s32.totalorder %s15, 4
    %p287 = pnand %p285, %p286
    %p288 = pneg %p287
    // Predicated region
    $region53: #{atlas_index_actor_forward.1} parent=5 // pred_check
      _
    $region54: #{atlas_index_actor_forward.1} parent=5 // pred_check_branch
      %290 = sbr.rel (%p287) target = $region56
    $region55: #{atlas_index_actor_forward.1} parent=5 // pred_region
      %s291 = ssub.s32 %s15, 1
      %p292 = scmp.lt.s32.totalorder %s20, 2
      %s293 = scalar_select %p292, %s20, 2
      %s294 = smul.addr %s293, 8
      %s295 = scalar_lea.vmem %s0, %s294
      %p296 = pneg %p41
      %p297 = pneg %p38
      %p298 = pneg %p62
      %p299 = pneg %p59
      %p300 = pneg %p83
      %p301 = pneg %p80
      %p302 = pneg %p104
      %p303 = pneg %p101
      %p304 = pneg %p125
      %p305 = pneg %p122
      %p306 = pneg %p146
      %p307 = pneg %p143
      %p308 = pneg %p167
      %p309 = pneg %p164
      %p310 = pneg %p188
      %p311 = pneg %p185
      %p312 = pneg %p209
      %p313 = pneg %p206
      %p314 = pneg %p235
      %p315 = pneg %p232
      %p316 = scmp.lt.s32.totalorder %s20, 2
      %s317 = scalar_select %p316, %s20, 2
      %s318 = smul.addr %s317, 8
      %s319 = scalar_lea.vmem %s9, %s318
      %p320 = scmp.lt.s32.totalorder %s20, 2
      %s321 = scalar_select %p320, %s20, 2
      %s322 = smul.addr %s321, 8
      %s323 = scalar_lea.vmem %s0, %s322
      %p324 = scmp.lt.s32.totalorder %s20, 2
      %s325 = scalar_select %p324, %s20, 2
      %s326 = smul.addr %s325, 8
      %s327 = scalar_lea.vmem %s9, %s326
      %v328 = vld [vmem:[%s323] sm:$0xff]
      %v329 = vld [vmem:[%s1] sm:$0xff]
      %v330 = vld [vmem:[%s1 + $0x8] sm:$0xff]
      %v331 = vld [vmem:[%s1 + $0x10] sm:$0xff]
      %v332 = vld [vmem:[%s1 + $0x18] sm:$0xff]
      %v333 = vld [vmem:[%s2] sm:$0x1]
      %v335 = vlaneseq
      %v336 = vshrl.u32 %v335, 7
      %v337 = vsub.s32 0, %v336
      %v338 = vrot.slane %v333, %v337
      %vm340 = vcmask 261120
      %v342 = vsel %vm340, %v328, 0
      %344 = vmatprep.subr.mxu0 0.0
      %345 = vmatpush1.msra.mxu0 %v329
      %346 = vmatprep.subr.mxu0 0.0
      %347 = vmatpush1.msra.mxu0 %v330
      %348 = vmatprep.subr.mxu0 0.0
      %349 = vmatpush1.msra.mxu0 %v331
      %350 = vmatprep.subr.mxu0 0.0
      %351 = vmatpush1.msra.mxu0 %v332
      %352 = vmatprep.subr.mxu0 0.0
      %353 = vmatpush1.msra.mxu0 0.0
      %354 = vmatprep.subr.mxu0 0.0
      %355 = vmatpush1.msra.mxu0 0.0
      %356 = vmatprep.subr.mxu0 0.0
      %357 = vmatpush1.msra.mxu0 0.0
      %358 = vmatprep.subr.mxu0 0.0
      %359 = vmatpush1.msra.mxu0 0.0
      %360 = vmatprep.subr.mxu0 0.0
      %361 = vmatpush1.msra.mxu0 0.0
      %362 = vmatprep.subr.mxu0 0.0
      %363 = vmatpush1.msra.mxu0 0.0
      %364 = vmatprep.subr.mxu0 0.0
      %365 = vmatpush1.msra.mxu0 0.0
      %366 = vmatprep.subr.mxu0 0.0
      %367 = vmatpush1.msra.mxu0 0.0
      %368 = vmatprep.subr.mxu0 0.0
      %369 = vmatpush1.msra.mxu0 0.0
      %370 = vmatprep.subr.mxu0 0.0
      %371 = vmatpush1.msra.mxu0 0.0
      %372 = vmatprep.subr.mxu0 0.0
      %373 = vmatpush1.msra.mxu0 0.0
      %374 = vmatprep.subr.mxu0 0.0
      %375 = vmatpush1.msra.mxu0 0.0
      %376 = vmatprep.subr.mxu0 0.0
      %377 = vmatpush1.msra.mxu0 0.0
      %378 = vmatprep.subr.mxu0 0.0
      %379 = vmatpush1.msra.mxu0 0.0
      %380 = vmatprep.subr.mxu0 0.0
      %381 = vmatpush1.msra.mxu0 0.0
      %382 = vmatprep.subr.mxu0 0.0
      %383 = vmatpush1.msra.mxu0 0.0
      %384 = vmatprep.subr.mxu0 0.0
      %385 = vmatpush1.msra.mxu0 0.0
      %386 = vmatprep.subr.mxu0 0.0
      %387 = vmatpush1.msra.mxu0 0.0
      %388 = vmatprep.subr.mxu0 0.0
      %389 = vmatpush1.msra.mxu0 0.0
      %390 = vmatprep.subr.mxu0 0.0
      %391 = vmatpush1.msra.mxu0 0.0
      %392 = vmatprep.subr.mxu0 0.0
      %393 = vmatpush1.msra.mxu0 0.0
      %394 = vmatprep.subr.mxu0 0.0
      %395 = vmatpush1.msra.mxu0 0.0
      %396 = vmatprep.subr.mxu0 0.0
      %397 = vmatpush1.msra.mxu0 0.0
      %398 = vmatprep.subr.mxu0 0.0
      %399 = vmatpush1.msra.mxu0 0.0
      %400 = vmatprep.subr.mxu0 0.0
      %401 = vmatpush1.msra.mxu0 0.0
      %402 = vmatprep.subr.mxu0 0.0
      %403 = vmatpush1.msra.mxu0 0.0
      %404 = vmatprep.subr.mxu0 0.0
      %405 = vmatpush1.msra.mxu0 0.0
      %406 = vmatprep.subr.mxu0 0.0
      %407 = vmatpush1.msra.mxu0 0.0
      %408 = vmatprep.mubr.f32.mxu0 0.0
      %409 = vmatmul.mubr.f32.gmra.mrb[0].mxu0 %v342
      %v410 = vpop.f32.mrb[0].mxu0
      %v411 = vadd.f32 %v338, %v410
      %v412 = vpop.f32.mrb[0].mxu0
      %413 = vdwg.mxu0
      %v414 = vmax.f32 %v411, 0.0
      %v415 = vld [vmem:[%s3] sm:$0xff]
      %v416 = vld [vmem:[%s3 + $0x8] sm:$0xff]
      %v417 = vld [vmem:[%s3 + $0x10] sm:$0xff]
      %v418 = vld [vmem:[%s3 + $0x18] sm:$0xff]
      %v419 = vld [vmem:[%s3 + $0x20] sm:$0xff]
      %v420 = vld [vmem:[%s3 + $0x28] sm:$0xff]
      %v421 = vld [vmem:[%s3 + $0x30] sm:$0xff]
      %v422 = vld [vmem:[%s3 + $0x38] sm:$0xff]
      %v423 = vld [vmem:[%s3 + $0x40] sm:$0xff]
      %v424 = vld [vmem:[%s3 + $0x48] sm:$0xff]
      %v425 = vld [vmem:[%s3 + $0x50] sm:$0xff]
      %v426 = vld [vmem:[%s3 + $0x58] sm:$0xff]
      %v427 = vld [vmem:[%s3 + $0x60] sm:$0xff]
      %v428 = vld [vmem:[%s3 + $0x68] sm:$0xff]
      %v429 = vld [vmem:[%s3 + $0x70] sm:$0xff]
      %v430 = vld [vmem:[%s3 + $0x78] sm:$0xff]
      %v431 = vld [vmem:[%s4] sm:$0x1]
      %v433 = vlaneseq
      %v434 = vshrl.u32 %v433, 7
      %v435 = vsub.s32 0, %v434
      %v436 = vrot.slane %v431, %v435
      %438 = vmatprep.subr.mxu0 0.0
      %439 = vmatpush1.msra.mxu0 %v415
      %440 = vmatprep.subr.mxu0 0.0
      %441 = vmatpush1.msra.mxu0 %v416
      %442 = vmatprep.subr.mxu0 0.0
      %443 = vmatpush1.msra.mxu0 %v417
      %444 = vmatprep.subr.mxu0 0.0
      %445 = vmatpush1.msra.mxu0 %v418
      %446 = vmatprep.subr.mxu0 0.0
      %447 = vmatpush1.msra.mxu0 %v419
      %448 = vmatprep.subr.mxu0 0.0
      %449 = vmatpush1.msra.mxu0 %v420
      %450 = vmatprep.subr.mxu0 0.0
      %451 = vmatpush1.msra.mxu0 %v421
      %452 = vmatprep.subr.mxu0 0.0
      %453 = vmatpush1.msra.mxu0 %v422
      %454 = vmatprep.subr.mxu0 0.0
      %455 = vmatpush1.msra.mxu0 %v423
      %456 = vmatprep.subr.mxu0 0.0
      %457 = vmatpush1.msra.mxu0 %v424
      %458 = vmatprep.subr.mxu0 0.0
      %459 = vmatpush1.msra.mxu0 %v425
      %460 = vmatprep.subr.mxu0 0.0
      %461 = vmatpush1.msra.mxu0 %v426
      %462 = vmatprep.subr.mxu0 0.0
      %463 = vmatpush1.msra.mxu0 %v427
      %464 = vmatprep.subr.mxu0 0.0
      %465 = vmatpush1.msra.mxu0 %v428
      %466 = vmatprep.subr.mxu0 0.0
      %467 = vmatpush1.msra.mxu0 %v429
      %468 = vmatprep.subr.mxu0 0.0
      %469 = vmatpush1.msra.mxu0 %v430
      %470 = vmatprep.subr.mxu0 0.0
      %471 = vmatpush1.msra.mxu0 0.0
      %472 = vmatprep.subr.mxu0 0.0
      %473 = vmatpush1.msra.mxu0 0.0
      %474 = vmatprep.subr.mxu0 0.0
      %475 = vmatpush1.msra.mxu0 0.0
      %476 = vmatprep.subr.mxu0 0.0
      %477 = vmatpush1.msra.mxu0 0.0
      %478 = vmatprep.subr.mxu0 0.0
      %479 = vmatpush1.msra.mxu0 0.0
      %480 = vmatprep.subr.mxu0 0.0
      %481 = vmatpush1.msra.mxu0 0.0
      %482 = vmatprep.subr.mxu0 0.0
      %483 = vmatpush1.msra.mxu0 0.0
      %484 = vmatprep.subr.mxu0 0.0
      %485 = vmatpush1.msra.mxu0 0.0
      %486 = vmatprep.subr.mxu0 0.0
      %487 = vmatpush1.msra.mxu0 0.0
      %488 = vmatprep.subr.mxu0 0.0
      %489 = vmatpush1.msra.mxu0 0.0
      %490 = vmatprep.subr.mxu0 0.0
      %491 = vmatpush1.msra.mxu0 0.0
      %492 = vmatprep.subr.mxu0 0.0
      %493 = vmatpush1.msra.mxu0 0.0
      %494 = vmatprep.subr.mxu0 0.0
      %495 = vmatpush1.msra.mxu0 0.0
      %496 = vmatprep.subr.mxu0 0.0
      %497 = vmatpush1.msra.mxu0 0.0
      %498 = vmatprep.subr.mxu0 0.0
      %499 = vmatpush1.msra.mxu0 0.0
      %500 = vmatprep.subr.mxu0 0.0
      %501 = vmatpush1.msra.mxu0 0.0
      %502 = vmatprep.mubr.f32.mxu0 0.0
      %503 = vmatmul.mubr.f32.gmra.mrb[0].mxu0 %v414
      %v504 = vpop.f32.mrb[0].mxu0
      %v505 = vadd.f32 %v436, %v504
      %v506 = vpop.f32.mrb[0].mxu0
      %507 = vdwg.mxu0
      %v508 = vtanh.pop %v505
      %v509 = vld [vmem:[%s5] sm:$0xff]
      %v510 = vld [vmem:[%s5 + $0x8] sm:$0xff]
      %v511 = vld [vmem:[%s5 + $0x10] sm:$0xff]
      %v512 = vld [vmem:[%s5 + $0x18] sm:$0xff]
      %v513 = vld [vmem:[%s5 + $0x20] sm:$0xff]
      %v514 = vld [vmem:[%s5 + $0x28] sm:$0xff]
      %v515 = vld [vmem:[%s5 + $0x30] sm:$0xff]
      %v516 = vld [vmem:[%s5 + $0x38] sm:$0xff]
      %v517 = vld [vmem:[%s5 + $0x40] sm:$0xff]
      %v518 = vld [vmem:[%s5 + $0x48] sm:$0xff]
      %v519 = vld [vmem:[%s5 + $0x50] sm:$0xff]
      %v520 = vld [vmem:[%s5 + $0x58] sm:$0xff]
      %v521 = vld [vmem:[%s5 + $0x60] sm:$0xff]
      %v522 = vld [vmem:[%s5 + $0x68] sm:$0xff]
      %v523 = vld [vmem:[%s5 + $0x70] sm:$0xff]
      %v524 = vld [vmem:[%s5 + $0x78] sm:$0xff]
      %v525 = vld [vmem:[%s6] sm:$0x1]
      %v527 = vlaneseq
      %v528 = vshrl.u32 %v527, 7
      %v529 = vsub.s32 0, %v528
      %v530 = vrot.slane %v525, %v529
      %532 = vmatprep.subr.mxu0 0.0
      %533 = vmatpush1.msra.mxu0 %v509
      %534 = vmatprep.subr.mxu0 0.0
      %535 = vmatpush1.msra.mxu0 %v510
      %536 = vmatprep.subr.mxu0 0.0
      %537 = vmatpush1.msra.mxu0 %v511
      %538 = vmatprep.subr.mxu0 0.0
      %539 = vmatpush1.msra.mxu0 %v512
      %540 = vmatprep.subr.mxu0 0.0
      %541 = vmatpush1.msra.mxu0 %v513
      %542 = vmatprep.subr.mxu0 0.0
      %543 = vmatpush1.msra.mxu0 %v514
      %544 = vmatprep.subr.mxu0 0.0
      %545 = vmatpush1.msra.mxu0 %v515
      %546 = vmatprep.subr.mxu0 0.0
      %547 = vmatpush1.msra.mxu0 %v516
      %548 = vmatprep.subr.mxu0 0.0
      %549 = vmatpush1.msra.mxu0 %v517
      %550 = vmatprep.subr.mxu0 0.0
      %551 = vmatpush1.msra.mxu0 %v518
      %552 = vmatprep.subr.mxu0 0.0
      %553 = vmatpush1.msra.mxu0 %v519
      %554 = vmatprep.subr.mxu0 0.0
      %555 = vmatpush1.msra.mxu0 %v520
      %556 = vmatprep.subr.mxu0 0.0
      %557 = vmatpush1.msra.mxu0 %v521
      %558 = vmatprep.subr.mxu0 0.0
      %559 = vmatpush1.msra.mxu0 %v522
      %560 = vmatprep.subr.mxu0 0.0
      %561 = vmatpush1.msra.mxu0 %v523
      %562 = vmatprep.subr.mxu0 0.0
      %563 = vmatpush1.msra.mxu0 %v524
      %564 = vmatprep.subr.mxu0 0.0
      %565 = vmatpush1.msra.mxu0 0.0
      %566 = vmatprep.subr.mxu0 0.0
      %567 = vmatpush1.msra.mxu0 0.0
      %568 = vmatprep.subr.mxu0 0.0
      %569 = vmatpush1.msra.mxu0 0.0
      %570 = vmatprep.subr.mxu0 0.0
      %571 = vmatpush1.msra.mxu0 0.0
      %572 = vmatprep.subr.mxu0 0.0
      %573 = vmatpush1.msra.mxu0 0.0
      %574 = vmatprep.subr.mxu0 0.0
      %575 = vmatpush1.msra.mxu0 0.0
      %576 = vmatprep.subr.mxu0 0.0
      %577 = vmatpush1.msra.mxu0 0.0
      %578 = vmatprep.subr.mxu0 0.0
      %579 = vmatpush1.msra.mxu0 0.0
      %580 = vmatprep.subr.mxu0 0.0
      %581 = vmatpush1.msra.mxu0 0.0
      %582 = vmatprep.subr.mxu0 0.0
      %583 = vmatpush1.msra.mxu0 0.0
      %584 = vmatprep.subr.mxu0 0.0
      %585 = vmatpush1.msra.mxu0 0.0
      %586 = vmatprep.subr.mxu0 0.0
      %587 = vmatpush1.msra.mxu0 0.0
      %588 = vmatprep.subr.mxu0 0.0
      %589 = vmatpush1.msra.mxu0 0.0
      %590 = vmatprep.subr.mxu0 0.0
      %591 = vmatpush1.msra.mxu0 0.0
      %592 = vmatprep.subr.mxu0 0.0
      %593 = vmatpush1.msra.mxu0 0.0
      %594 = vmatprep.subr.mxu0 0.0
      %595 = vmatpush1.msra.mxu0 0.0
      %596 = vmatprep.mubr.f32.mxu0 0.0
      %597 = vmatmul.mubr.f32.gmra.mrb[0].mxu0 %v508
      %v598 = vpop.f32.mrb[0].mxu0
      %v599 = vadd.f32 %v530, %v598
      %v600 = vpop.f32.mrb[0].mxu0
      %601 = vdwg.mxu0
      %v602 = vtanh.pop %v599
      %v603 = vld [vmem:[%s7] sm:$0xff]
      %v604 = vld [vmem:[%s7 + $0x8] sm:$0xff]
      %v605 = vld [vmem:[%s7 + $0x10] sm:$0xff]
      %v606 = vld [vmem:[%s7 + $0x18] sm:$0xff]
      %v607 = vld [vmem:[%s7 + $0x20] sm:$0xff]
      %v608 = vld [vmem:[%s7 + $0x28] sm:$0xff]
      %v609 = vld [vmem:[%s7 + $0x30] sm:$0xff]
      %v610 = vld [vmem:[%s7 + $0x38] sm:$0xff]
      %v611 = vld [vmem:[%s7 + $0x40] sm:$0xff]
      %v612 = vld [vmem:[%s7 + $0x48] sm:$0xff]
      %v613 = vld [vmem:[%s7 + $0x50] sm:$0xff]
      %v614 = vld [vmem:[%s7 + $0x58] sm:$0xff]
      %v615 = vld [vmem:[%s7 + $0x60] sm:$0xff]
      %v616 = vld [vmem:[%s7 + $0x68] sm:$0xff]
      %v617 = vld [vmem:[%s7 + $0x70] sm:$0xff]
      %v618 = vld [vmem:[%s7 + $0x78] sm:$0xff]
      %v619 = vld [vmem:[%s8] sm:$0x1]
      %v621 = vlaneseq
      %v622 = vshrl.u32 %v621, 7
      %v623 = vsub.s32 0, %v622
      %v624 = vrot.slane %v619, %v623
      %626 = vmatprep.subr.mxu0 0.0
      %627 = vmatpush1.msra.mxu0 %v603
      %628 = vmatprep.subr.mxu0 0.0
      %629 = vmatpush1.msra.mxu0 %v604
      %630 = vmatprep.subr.mxu0 0.0
      %631 = vmatpush1.msra.mxu0 %v605
      %632 = vmatprep.subr.mxu0 0.0
      %633 = vmatpush1.msra.mxu0 %v606
      %634 = vmatprep.subr.mxu0 0.0
      %635 = vmatpush1.msra.mxu0 %v607
      %636 = vmatprep.subr.mxu0 0.0
      %637 = vmatpush1.msra.mxu0 %v608
      %638 = vmatprep.subr.mxu0 0.0
      %639 = vmatpush1.msra.mxu0 %v609
      %640 = vmatprep.subr.mxu0 0.0
      %641 = vmatpush1.msra.mxu0 %v610
      %642 = vmatprep.subr.mxu0 0.0
      %643 = vmatpush1.msra.mxu0 %v611
      %644 = vmatprep.subr.mxu0 0.0
      %645 = vmatpush1.msra.mxu0 %v612
      %646 = vmatprep.subr.mxu0 0.0
      %647 = vmatpush1.msra.mxu0 %v613
      %648 = vmatprep.subr.mxu0 0.0
      %649 = vmatpush1.msra.mxu0 %v614
      %650 = vmatprep.subr.mxu0 0.0
      %651 = vmatpush1.msra.mxu0 %v615
      %652 = vmatprep.subr.mxu0 0.0
      %653 = vmatpush1.msra.mxu0 %v616
      %654 = vmatprep.subr.mxu0 0.0
      %655 = vmatpush1.msra.mxu0 %v617
      %656 = vmatprep.subr.mxu0 0.0
      %657 = vmatpush1.msra.mxu0 %v618
      %658 = vmatprep.subr.mxu0 0.0
      %659 = vmatpush1.msra.mxu0 0.0
      %660 = vmatprep.subr.mxu0 0.0
      %661 = vmatpush1.msra.mxu0 0.0
      %662 = vmatprep.subr.mxu0 0.0
      %663 = vmatpush1.msra.mxu0 0.0
      %664 = vmatprep.subr.mxu0 0.0
      %665 = vmatpush1.msra.mxu0 0.0
      %666 = vmatprep.subr.mxu0 0.0
      %667 = vmatpush1.msra.mxu0 0.0
      %668 = vmatprep.subr.mxu0 0.0
      %669 = vmatpush1.msra.mxu0 0.0
      %670 = vmatprep.subr.mxu0 0.0
      %671 = vmatpush1.msra.mxu0 0.0
      %672 = vmatprep.subr.mxu0 0.0
      %673 = vmatpush1.msra.mxu0 0.0
      %674 = vmatprep.subr.mxu0 0.0
      %675 = vmatpush1.msra.mxu0 0.0
      %676 = vmatprep.subr.mxu0 0.0
      %677 = vmatpush1.msra.mxu0 0.0
      %678 = vmatprep.subr.mxu0 0.0
      %679 = vmatpush1.msra.mxu0 0.0
      %680 = vmatprep.subr.mxu0 0.0
      %681 = vmatpush1.msra.mxu0 0.0
      %682 = vmatprep.subr.mxu0 0.0
      %683 = vmatpush1.msra.mxu0 0.0
      %684 = vmatprep.subr.mxu0 0.0
      %685 = vmatpush1.msra.mxu0 0.0
      %686 = vmatprep.subr.mxu0 0.0
      %687 = vmatpush1.msra.mxu0 0.0
      %688 = vmatprep.subr.mxu0 0.0
      %689 = vmatpush1.msra.mxu0 0.0
      %690 = vmatprep.mubr.f32.mxu0 0.0
      %691 = vmatmul.mubr.f32.gmra.mrb[0].mxu0 %v602
      %v692 = vpop.f32.mrb[0].mxu0
      %v693 = vadd.f32 %v624, %v692
      %v694 = vpop.f32.mrb[0].mxu0
      %695 = vdwg.mxu0
      %v696 = vsub.f32 0.0, %v693
      %v697 = vmul.f32 %v696, 1.442695
      %v698 = vpow.pop %v697
      %v699 = vadd.f32 %v698, 1.0
      %v700 = vrcp.pop %v699
      %v701 = vmul.f32 1.0, %v700
      %702 = vst [vmem:[%s327] sm:$0xff] %v701
      %p703 = scmp.lt.s32.totalorder %s20, 2
      %s704 = scalar_select %p703, %s20, 2
      %s705 = smul.addr %s704, 8
      %s706 = scalar_lea.vmem %s9, %s705
      // Predicated region
      $region57: #{atlas_index_actor_forward.1} parent=55 // pred_check
        %p707 = pneg %p232
      $region58: #{atlas_index_actor_forward.1} parent=55 // pred_check_branch
        %709 = sbr.rel (%p707) target = $region60
      $region59: #{atlas_index_actor_forward.1} parent=55 // pred_region
        _
      $region60: #{atlas_index_actor_forward.1} parent=55 // pred_fallthru
        _
    $region56: #{atlas_index_actor_forward.1} parent=5 // pred_fallthru
      _
    %p710 = scmp.le.s32.totalorder 2, %s15
    // Predicated region
    $region61: #{atlas_index_actor_forward.1} parent=5 // pred_check
      %p711 = pneg %p710
    $region62: #{atlas_index_actor_forward.1} parent=5 // pred_check_branch
      %713 = sbr.rel (%p711) target = $region64
    $region63: #{atlas_index_actor_forward.1} parent=5 // pred_region
      %s714 = ssub.s32 %s15, 2
      // Predicated region
      $region65: #{atlas_index_actor_forward.1} parent=63 // pred_check
        %p715 = pneg %p238
      $region66: #{atlas_index_actor_forward.1} parent=63 // pred_check_branch
        %717 = sbr.rel (%p715) target = $region68
      $region67: #{atlas_index_actor_forward.1} parent=63 // pred_region
        %p718 = scmp.lt.s32.totalorder %s21, 2
        %s719 = scalar_select %p718, %s21, 2
        %s720 = smul.addr %s719, 8
        %s721 = scalar_lea.vmem %s9, %s720
      $region68: #{atlas_index_actor_forward.1} parent=63 // pred_fallthru
        _
    $region64: #{atlas_index_actor_forward.1} parent=5 // pred_fallthru
      _
  $region6: #{atlas_index_actor_forward.1} parent=0 // loop_footer
    %s19 = sadd.s32 1, %s15
  $region7: #{atlas_index_actor_forward.1} parent=0 // loop_footer_branch
    %14 = sbr.rel target = $region3
  $region8: #{atlas_index_actor_forward.1} parent=0 // loop_exit
    _

</llo_original>
